<compile_context>
chip_gen: v7x
topology: tpu7x:2x2x1
jax: 0.10.0
libtpu: 0.0.40
codegen_flags: <defaults>
</compile_context>

<pallas_src>
import jax
import jax.numpy as jnp
from jax import lax
from jax.experimental import pallas as pl
from jax.experimental.pallas import tpu as pltpu

LANES = 128
SUBLANE_ALIGN = 32                    # safe block-row alignment for f32/bf16/int8
TARGET_STEP_BYTES = 4 * 1024 * 1024   # ~4 MiB of input DMA per grid step
CHUNK_ROWS = 512                      # rows per in-kernel accumulation chunk


def _round_up(x, m):
    return ((x + m - 1) // m) * m


def _round_down(x, m):
    return (x // m) * m


def _default_num_parts():
    """Use 2 partitions only on chips whose 'parallel' grid axis spans 2 TensorCores."""
    try:
        kind = jax.devices()[0].device_kind.lower()
    except Exception:
        return 1
    return 2 if any(tag in kind for tag in ("v7", "v4", "v5p")) else 1


def _make_dice_kernel(tile_rows, chunk, n_chunks, rows_valid):
    """Kernel accumulating partial sums of x*t and x+t into resident (8,128) slabs."""

    def kernel(x_ref, t_ref, xt_ref, st_ref):
        part = pl.program_id(0)
        step = pl.program_id(1)
        steps = pl.num_programs(1)
        blk = part * steps + step           # intended (unclamped) block index
        row0 = blk * tile_rows              # intended first global row of this tile

        @pl.when(step == 0)
        def _init():
            xt_ref[...] = jnp.zeros_like(xt_ref)
            st_ref[...] = jnp.zeros_like(st_ref)

        def accumulate(masked):
            # Small chunked loop keeps casts / products to <=(chunk,128) f32
            # temporaries instead of full-tile VMEM temps.
            @pl.loop(0, n_chunks)
            def _chunk(c):
                off = pl.multiple_of(c * chunk, chunk)
                xc = x_ref[pl.ds(off, chunk), :].astype(jnp.float32)
                tc = t_ref[pl.ds(off, chunk), :].astype(jnp.float32)
                if masked:
                    # Zero out rows past the valid extent (partial boundary
                    # block data beyond the array is unspecified, and fully
                    # out-of-range steps must contribute nothing).
                    rid = row0 + off + lax.broadcasted_iota(
                        jnp.int32, (chunk, LANES), 0)
                    keep = rid < rows_valid
                    xc = jnp.where(keep, xc, 0.0)
                    tc = jnp.where(keep, tc, 0.0)
                # (chunk,128) -> (chunk//8, 8, 128): layout-free; summing the
                # leading axis is pure VPU adds into one vreg per accumulator.
                x3 = xc.reshape(chunk // 8, 8, LANES)
                t3 = tc.reshape(chunk // 8, 8, LANES)
                xt_ref[0] += jnp.sum(x3 * t3, axis=0)   # f32 product (accuracy)
                st_ref[0] += jnp.sum(x3 + t3, axis=0)   # fused sum(x)+sum(t)

        in_bounds = (row0 + tile_rows) <= rows_valid

        @pl.when(in_bounds)
        def _full_tile():
            accumulate(False)

        @pl.when(jnp.logical_not(in_bounds))
        def _tail_tile():
            accumulate(True)

    return kernel


def dice_loss(inputs, targets, smooth=1.0, *, tile_rows=None, num_parts=None):
    """DiceLoss.forward: 1 - (2*sum(x*t)+smooth) / (sum(x)+sum(t)+smooth).

    Pass `inputs`/`targets` in their narrowest dtype (bool/int8 masks, bf16
    probabilities): the kernel is HBM-bound and upcasts to f32 in VMEM.
    """
    x = jnp.reshape(inputs, (-1,))
    t = jnp.reshape(targets, (-1,))
    if x.dtype == jnp.bool_:
        x = x.astype(jnp.int8)
    if t.dtype == jnp.bool_:
        t = t.astype(jnp.int8)

    n_total = x.shape[0]
    if n_total == 0:
        return jnp.float32(0.0)

    rows = pl.cdiv(n_total, LANES)
    # Pad only when unavoidable: tiny inputs (< one aligned row group) or a
    # non-multiple-of-128 element count.  Zero padding is exact for all dice
    # sums.  128-aligned inputs (the common segmentation case) are streamed
    # with NO wrapper-side copy; the ragged row tail is masked in-kernel.
    if rows < SUBLANE_ALIGN:
        rows = SUBLANE_ALIGN
    n_main = rows * LANES
    if n_main != n_total:
        x = jnp.pad(x, (0, n_main - n_total))
        t = jnp.pad(t, (0, n_main - n_total))
    x2 = x.reshape(rows, LANES)
    t2 = t.reshape(rows, LANES)

    # Dtype-scaled tile: ~4 MiB of input per grid step (f32+f32 -> 4096 rows,
    # bf16+bf16 -> 8192, int8+int8 -> 16384), capped for v7x's 64 MiB VMEM.
    bytes_per_row = LANES * (x2.dtype.itemsize + t2.dtype.itemsize)
    if tile_rows is None:
        tr = _round_down(TARGET_STEP_BYTES // bytes_per_row, CHUNK_ROWS)
        tr = min(max(tr, SUBLANE_ALIGN), 16384)
    else:
        tr = max(SUBLANE_ALIGN, _round_up(int(tile_rows), SUBLANE_ALIGN))
    tr = min(tr, _round_down(rows, SUBLANE_ALIGN))

    if num_parts is None:
        num_parts = _default_num_parts()
    nb = pl.cdiv(rows, tr)                   # number of real data blocks
    num_parts = max(1, min(int(num_parts), nb))
    steps = pl.cdiv(nb, num_parts)

    chunk = CHUNK_ROWS if (tr % CHUNK_ROWS == 0) else tr
    n_chunks = tr // chunk

    def in_map(p, s):
        # Clamp so the (at most num_parts-1) fully out-of-range steps re-use
        # the last block's buffer (no extra DMA); the kernel masks them to 0.
        return (jnp.minimum(p * steps + s, nb - 1), 0)

    def out_map(p, s):
        return (p, 0, 0)

    part_shape = jax.ShapeDtypeStruct((num_parts, 8, LANES), jnp.float32)
    tile_bytes = tr * bytes_per_row
    vmem_limit = int(max(32 * 1024 * 1024, min(6 * tile_bytes, 96 * 1024 * 1024)))
    bytes_accessed = (x2.size * x2.dtype.itemsize + t2.size * t2.dtype.itemsize
                      + 2 * num_parts * 8 * LANES * 4)

    kernel = _make_dice_kernel(tr, chunk, n_chunks, rows)

    xt, st = pl.pallas_call(
        kernel,
        out_shape=(part_shape, part_shape),
        grid_spec=pltpu.PrefetchScalarGridSpec(
            num_scalar_prefetch=0,
            grid=(num_parts, steps),
            in_specs=[
                pl.BlockSpec((tr, LANES), in_map),
                pl.BlockSpec((tr, LANES), in_map),
            ],
            out_specs=(
                pl.BlockSpec((1, 8, LANES), out_map),
                pl.BlockSpec((1, 8, LANES), out_map),
            ),
        ),
        compiler_params=pltpu.CompilerParams(
            dimension_semantics=("parallel", "arbitrary"),
            vmem_limit_bytes=vmem_limit),
        cost_estimate=pl.CostEstimate(
            flops=5 * rows * LANES, transcendentals=0,
            bytes_accessed=bytes_accessed),
    )(x2, t2)

    # Tiny epilogue: cross-lane reductions + scalar dice formula.
    intersection = jnp.sum(xt)
    total = jnp.sum(st)                      # == sum(x) + sum(t)
    dice = (2.0 * intersection + smooth) / (total + smooth)
    return 1.0 - dice


def _dice_loss_ref(inputs, targets, smooth=1.0):
    """Pure-JAX reference mirroring the PyTorch DiceLoss.forward."""
    x = jnp.reshape(inputs, (-1,)).astype(jnp.float32)
    t = jnp.reshape(targets, (-1,)).astype(jnp.float32)
    intersection = jnp.sum(x * t)
    dice = (2.0 * intersection + smooth) / (jnp.sum(x) + jnp.sum(t) + smooth)
    return 1.0 - dice


if __name__ == "__main__":
    key = jax.random.PRNGKey(0)
    k1, k2, k3, k4 = jax.random.split(key, 4)

    # Small NCHW segmentation-style inputs (probabilities + binary mask).
    x1 = jax.nn.sigmoid(jax.random.normal(k1, (2, 4, 16, 16), jnp.float32))
    t1 = (jax.random.uniform(k2, (2, 4, 16, 16)) > 0.5).astype(jnp.float32)
    loss1 = jax.block_until_ready(dice_loss(x1, t1))
    ref1 = jax.block_until_ready(_dice_loss_ref(x1, t1))
    assert jnp.allclose(loss1, ref1, rtol=1e-5, atol=1e-5), (loss1, ref1)

    # Non-128-aligned element count: exercises the in-kernel tail-masking path.
    x2 = jax.nn.sigmoid(jax.random.normal(k3, (2, 4, 33, 65), jnp.float32))
    t2 = (jax.random.uniform(k4, (2, 4, 33, 65)) > 0.5).astype(jnp.float32)
    loss2 = jax.block_until_ready(dice_loss(x2, t2))
    ref2 = jax.block_until_ready(_dice_loss_ref(x2, t2))
    assert jnp.allclose(loss2, ref2, rtol=1e-5, atol=1e-5), (loss2, ref2)

    print("KERNEL_OK")
</pallas_src>

<mosaic_0001>
module attributes {stable_mosaic.version = 11 : i64} {
  func.func @kernel(%arg0: i32, %arg1: i32, %arg2: memref<32x128xf32, #tpu.memory_space<vmem>>, %arg3: memref<32x128xf32, #tpu.memory_space<vmem>>, %arg4: memref<1x8x128xf32, #tpu.memory_space<vmem>>, %arg5: memref<1x8x128xf32, #tpu.memory_space<vmem>>) attributes {dimension_semantics = [#tpu.dimension_semantics<parallel>, #tpu.dimension_semantics<arbitrary>], iteration_bounds = array<i64: 1, 1>, scalar_prefetch = 0 : i64, scratch_operands = 0 : i64, tpu.core_type = #tpu.core_type<tc>, window_params = [{transform_indices = @transform_0, window_bounds = array<i64: 32, 128>}, {transform_indices = @transform_1, window_bounds = array<i64: 32, 128>}, {transform_indices = @transform_2, window_bounds = array<i64: 1, 8, 128>}, {transform_indices = @transform_3, window_bounds = array<i64: 1, 8, 128>}]} {
    %c1_i32 = arith.constant 1 : i32
    %0 = arith.muli %arg0, %c1_i32 : i32
    %1 = arith.addi %0, %arg1 : i32
    %c32_i32 = arith.constant 32 : i32
    %2 = arith.muli %1, %c32_i32 : i32
    %c0_i32 = arith.constant 0 : i32
    %3 = arith.cmpi eq, %arg1, %c0_i32 : i32
    %4 = arith.extui %3 : i1 to i32
    %c0_i32_0 = arith.constant 0 : i32
    %5 = arith.cmpi ne, %4, %c0_i32_0 : i32
    scf.if %5 {
      %cst = arith.constant 0.000000e+00 : f32
      %13 = vector.broadcast %cst : f32 to vector<1x8x128xf32>
      %c0 = arith.constant 0 : index
      %c0_5 = arith.constant 0 : index
      %c0_6 = arith.constant 0 : index
      %14 = vector.load %arg4[%c0, %c0_5, %c0_6] : memref<1x8x128xf32, #tpu.memory_space<vmem>>, vector<1x8x128xf32>
      tpu.vector_store %arg4[%c0, %c0_5, %c0_6], %13 {strides = array<i32>} : memref<1x8x128xf32, #tpu.memory_space<vmem>>, vector<1x8x128xf32>,
      %cst_7 = arith.constant 0.000000e+00 : f32
      %15 = vector.broadcast %cst_7 : f32 to vector<1x8x128xf32>
      %c0_8 = arith.constant 0 : index
      %c0_9 = arith.constant 0 : index
      %c0_10 = arith.constant 0 : index
      %16 = vector.load %arg5[%c0_8, %c0_9, %c0_10] : memref<1x8x128xf32, #tpu.memory_space<vmem>>, vector<1x8x128xf32>
      tpu.vector_store %arg5[%c0_8, %c0_9, %c0_10], %15 {strides = array<i32>} : memref<1x8x128xf32, #tpu.memory_space<vmem>>, vector<1x8x128xf32>,
    } else {
    }
    %c32_i32_1 = arith.constant 32 : i32
    %6 = arith.addi %2, %c32_i32_1 : i32
    %c32_i32_2 = arith.constant 32 : i32
    %7 = arith.cmpi sle, %6, %c32_i32_2 : i32
    %8 = arith.extui %7 : i1 to i32
    %c0_i32_3 = arith.constant 0 : i32
    %9 = arith.cmpi ne, %8, %c0_i32_3 : i32
    scf.if %9 {
      %c0_i32_5 = arith.constant 0 : i32
      %c1_i32_6 = arith.constant 1 : i32
      %13 = arith.muli %c0_i32_5, %c1_i32_6 : i32
      %c0_i32_7 = arith.constant 0 : i32
      %14 = arith.addi %c0_i32_7, %13 : i32
      %c32_i32_8 = arith.constant 32 : i32
      %15 = arith.muli %14, %c32_i32_8 : i32
      %16 = tpu.assume_multiple %15, 32 : i32
      %17 = arith.index_cast %16 : i32 to index
      %c0 = arith.constant 0 : index
      %18 = vector.load %arg2[%17, %c0] : memref<32x128xf32, #tpu.memory_space<vmem>>, vector<32x128xf32>
      %19 = arith.index_cast %16 : i32 to index
      %c0_9 = arith.constant 0 : index
      %20 = vector.load %arg3[%19, %c0_9] : memref<32x128xf32, #tpu.memory_space<vmem>>, vector<32x128xf32>
      %21 = vector.shape_cast %18 : vector<32x128xf32> to vector<4x8x128xf32>
      %22 = vector.shape_cast %20 : vector<32x128xf32> to vector<4x8x128xf32>
      %c0_10 = arith.constant 0 : index
      %c0_11 = arith.constant 0 : index
      %c0_12 = arith.constant 0 : index
      %23 = vector.load %arg4[%c0_10, %c0_11, %c0_12] : memref<1x8x128xf32, #tpu.memory_space<vmem>>, vector<1x8x128xf32>
      %24 = vector.shape_cast %23 : vector<1x8x128xf32> to vector<8x128xf32>
      %25 = arith.mulf %21, %22 : vector<4x8x128xf32>
      %cst = arith.constant dense<0.000000e+00> : vector<8x128xf32>
      %26 = vector.multi_reduction <add>, %25, %cst [0] : vector<4x8x128xf32> to vector<8x128xf32>
      %27 = arith.addf %24, %26 : vector<8x128xf32>
      %c0_13 = arith.constant 0 : index
      %c0_14 = arith.constant 0 : index
      %c0_15 = arith.constant 0 : index
      %28 = vector.load %arg4[%c0_13, %c0_14, %c0_15] : memref<1x8x128xf32, #tpu.memory_space<vmem>>, vector<1x8x128xf32>
      %29 = vector.shape_cast %28 : vector<1x8x128xf32> to vector<8x128xf32>
      %30 = vector.shape_cast %27 : vector<8x128xf32> to vector<1x8x128xf32>
      tpu.vector_store %arg4[%c0_13, %c0_14, %c0_15], %30 {strides = array<i32>} : memref<1x8x128xf32, #tpu.memory_space<vmem>>, vector<1x8x128xf32>,
      %c0_16 = arith.constant 0 : index
      %c0_17 = arith.constant 0 : index
      %c0_18 = arith.constant 0 : index
      %31 = vector.load %arg5[%c0_16, %c0_17, %c0_18] : memref<1x8x128xf32, #tpu.memory_space<vmem>>, vector<1x8x128xf32>
      %32 = vector.shape_cast %31 : vector<1x8x128xf32> to vector<8x128xf32>
      %33 = arith.addf %21, %22 : vector<4x8x128xf32>
      %cst_19 = arith.constant dense<0.000000e+00> : vector<8x128xf32>
      %34 = vector.multi_reduction <add>, %33, %cst_19 [0] : vector<4x8x128xf32> to vector<8x128xf32>
      %35 = arith.addf %32, %34 : vector<8x128xf32>
      %c0_20 = arith.constant 0 : index
      %c0_21 = arith.constant 0 : index
      %c0_22 = arith.constant 0 : index
      %36 = vector.load %arg5[%c0_20, %c0_21, %c0_22] : memref<1x8x128xf32, #tpu.memory_space<vmem>>, vector<1x8x128xf32>
      %37 = vector.shape_cast %36 : vector<1x8x128xf32> to vector<8x128xf32>
      %38 = vector.shape_cast %35 : vector<8x128xf32> to vector<1x8x128xf32>
      tpu.vector_store %arg5[%c0_20, %c0_21, %c0_22], %38 {strides = array<i32>} : memref<1x8x128xf32, #tpu.memory_space<vmem>>, vector<1x8x128xf32>,
      %c1_i32_23 = arith.constant 1 : i32
    } else {
    }
    %true = arith.constant true
    %10 = arith.xori %7, %true : i1
    %11 = arith.extui %10 : i1 to i32
    %c0_i32_4 = arith.constant 0 : i32
    %12 = arith.cmpi ne, %11, %c0_i32_4 : i32
    scf.if %12 {
      %c0_i32_5 = arith.constant 0 : i32
      %c1_i32_6 = arith.constant 1 : i32
      %13 = arith.muli %c0_i32_5, %c1_i32_6 : i32
      %c0_i32_7 = arith.constant 0 : i32
      %14 = arith.addi %c0_i32_7, %13 : i32
      %c32_i32_8 = arith.constant 32 : i32
      %15 = arith.muli %14, %c32_i32_8 : i32
      %16 = tpu.assume_multiple %15, 32 : i32
      %17 = arith.index_cast %16 : i32 to index
      %c0 = arith.constant 0 : index
      %18 = vector.load %arg2[%17, %c0] : memref<32x128xf32, #tpu.memory_space<vmem>>, vector<32x128xf32>
      %19 = arith.index_cast %16 : i32 to index
      %c0_9 = arith.constant 0 : index
      %20 = vector.load %arg3[%19, %c0_9] : memref<32x128xf32, #tpu.memory_space<vmem>>, vector<32x128xf32>
      %21 = arith.addi %2, %16 : i32
      %22 = tpu.iota {dimensions = array<i32: 0>} : vector<32x128xi32>
      %23 = vector.broadcast %21 : i32 to vector<32x128xi32>
      %24 = arith.addi %23, %22 : vector<32x128xi32>
      %c32_i32_10 = arith.constant 32 : i32
      %25 = vector.broadcast %c32_i32_10 : i32 to vector<32x128xi32>
      %26 = arith.cmpi slt, %24, %25 : vector<32x128xi32>
      %cst = arith.constant 0.000000e+00 : f32
      %27 = vector.broadcast %cst : f32 to vector<32x128xf32>
      %28 = arith.select %26, %18, %27 : vector<32x128xi1>, vector<32x128xf32>
      %cst_11 = arith.constant 0.000000e+00 : f32
      %29 = vector.broadcast %cst_11 : f32 to vector<32x128xf32>
      %30 = arith.select %26, %20, %29 : vector<32x128xi1>, vector<32x128xf32>
      %31 = vector.shape_cast %28 : vector<32x128xf32> to vector<4x8x128xf32>
      %32 = vector.shape_cast %30 : vector<32x128xf32> to vector<4x8x128xf32>
      %c0_12 = arith.constant 0 : index
      %c0_13 = arith.constant 0 : index
      %c0_14 = arith.constant 0 : index
      %33 = vector.load %arg4[%c0_12, %c0_13, %c0_14] : memref<1x8x128xf32, #tpu.memory_space<vmem>>, vector<1x8x128xf32>
      %34 = vector.shape_cast %33 : vector<1x8x128xf32> to vector<8x128xf32>
      %35 = arith.mulf %31, %32 : vector<4x8x128xf32>
      %cst_15 = arith.constant dense<0.000000e+00> : vector<8x128xf32>
      %36 = vector.multi_reduction <add>, %35, %cst_15 [0] : vector<4x8x128xf32> to vector<8x128xf32>
      %37 = arith.addf %34, %36 : vector<8x128xf32>
      %c0_16 = arith.constant 0 : index
      %c0_17 = arith.constant 0 : index
      %c0_18 = arith.constant 0 : index
      %38 = vector.load %arg4[%c0_16, %c0_17, %c0_18] : memref<1x8x128xf32, #tpu.memory_space<vmem>>, vector<1x8x128xf32>
      %39 = vector.shape_cast %38 : vector<1x8x128xf32> to vector<8x128xf32>
      %40 = vector.shape_cast %37 : vector<8x128xf32> to vector<1x8x128xf32>
      tpu.vector_store %arg4[%c0_16, %c0_17, %c0_18], %40 {strides = array<i32>} : memref<1x8x128xf32, #tpu.memory_space<vmem>>, vector<1x8x128xf32>,
      %c0_19 = arith.constant 0 : index
      %c0_20 = arith.constant 0 : index
      %c0_21 = arith.constant 0 : index
      %41 = vector.load %arg5[%c0_19, %c0_20, %c0_21] : memref<1x8x128xf32, #tpu.memory_space<vmem>>, vector<1x8x128xf32>
      %42 = vector.shape_cast %41 : vector<1x8x128xf32> to vector<8x128xf32>
      %43 = arith.addf %31, %32 : vector<4x8x128xf32>
      %cst_22 = arith.constant dense<0.000000e+00> : vector<8x128xf32>
      %44 = vector.multi_reduction <add>, %43, %cst_22 [0] : vector<4x8x128xf32> to vector<8x128xf32>
      %45 = arith.addf %42, %44 : vector<8x128xf32>
      %c0_23 = arith.constant 0 : index
      %c0_24 = arith.constant 0 : index
      %c0_25 = arith.constant 0 : index
      %46 = vector.load %arg5[%c0_23, %c0_24, %c0_25] : memref<1x8x128xf32, #tpu.memory_space<vmem>>, vector<1x8x128xf32>
      %47 = vector.shape_cast %46 : vector<1x8x128xf32> to vector<8x128xf32>
      %48 = vector.shape_cast %45 : vector<8x128xf32> to vector<1x8x128xf32>
      tpu.vector_store %arg5[%c0_23, %c0_24, %c0_25], %48 {strides = array<i32>} : memref<1x8x128xf32, #tpu.memory_space<vmem>>, vector<1x8x128xf32>,
      %c1_i32_26 = arith.constant 1 : i32
    } else {
    }
    return
  }
  func.func @transform_0(%arg0: i32, %arg1: i32) -> (i32, i32) {
    %c1_i32 = arith.constant 1 : i32
    %0 = arith.muli %arg0, %c1_i32 : i32
    %1 = arith.addi %0, %arg1 : i32
    %c0_i32 = arith.constant 0 : i32
    %2 = arith.minsi %1, %c0_i32 : i32
    %c0_i32_0 = arith.constant 0 : i32
    %c0_i32_1 = arith.constant 0 : i32
    return %2, %c0_i32_0 : i32, i32
  }
  func.func @transform_1(%arg0: i32, %arg1: i32) -> (i32, i32) {
    %c1_i32 = arith.constant 1 : i32
    %0 = arith.muli %arg0, %c1_i32 : i32
    %1 = arith.addi %0, %arg1 : i32
    %c0_i32 = arith.constant 0 : i32
    %2 = arith.minsi %1, %c0_i32 : i32
    %c0_i32_0 = arith.constant 0 : i32
    %c0_i32_1 = arith.constant 0 : i32
    return %2, %c0_i32_0 : i32, i32
  }
  func.func @transform_2(%arg0: i32, %arg1: i32) -> (i32, i32, i32) {
    %c0_i32 = arith.constant 0 : i32
    %c0_i32_0 = arith.constant 0 : i32
    %c0_i32_1 = arith.constant 0 : i32
    return %arg0, %c0_i32, %c0_i32_0 : i32, i32, i32
  }
  func.func @transform_3(%arg0: i32, %arg1: i32) -> (i32, i32, i32) {
    %c0_i32 = arith.constant 0 : i32
    %c0_i32_0 = arith.constant 0 : i32
    %c0_i32_1 = arith.constant 0 : i32
    return %arg0, %c0_i32, %c0_i32_0 : i32, i32, i32
  }
}

</mosaic_0001>

<llo_original>
// kernel: tpu_custom_call.1
$region0: #{tpu_custom_call.1}
  #allocation0 [shape = 'u32[]', space=smem, size = 0x4, offset = 0x4, fixed_abs, tag = 'smem constant byte address 0x4 - core index']
  #allocation1 [shape = 'u32[144,128]{1,0:T(1,128)}', space=vmem, size = 0x12000, scoped, tag = 'internal scratch']
  %s0 = inlined_call_operand.hbm [shape: f32[32,128], index: 0, kind: input, shape index: {}]
  %s1 = inlined_call_operand.hbm [shape: f32[32,128], index: 1, kind: input, shape index: {}]
  %s2 = inlined_call_operand.hbm [shape: f32[1,8,128], index: 2, kind: output, shape index: {0}]
  %s3 = inlined_call_operand.hbm [shape: f32[1,8,128], index: 3, kind: output, shape index: {1}]
  %4 = xla_tuple %s2, %s3
  %s5 = sld [smem:[#allocation0]]
  $region46: #{tpu_custom_call.1} parent=0
    _
  %s7 = ssub.s32 1, %s5
  %s8 = scalar_select 0, %s7, %s5
  $region1: #{tpu_custom_call.1} parent=0
    #allocation2 [shape = 'u8[16384]{0}', space=vmem, size = 0x4000, scoped, tag = 'input window, operand 0, single buffered']
    #allocation3 [shape = 's32[1]{0}', space=sflag, size = 0x4, scoped, tag = 'scoped memory for tpu_custom_call.1']
    #allocation4 [shape = 's32[1]{0}', space=sflag, size = 0x4, scoped, tag = 'scoped memory for tpu_custom_call.1']
    #allocation5 [shape = 'u8[16384]{0}', space=vmem, size = 0x4000, scoped, tag = 'input window, operand 1, single buffered']
    #allocation6 [shape = 's32[1]{0}', space=sflag, size = 0x4, scoped, tag = 'scoped memory for tpu_custom_call.1']
    #allocation7 [shape = 'u8[4096]{0}', space=vmem, size = 0x1000, scoped, tag = 'output window, operand 0, single buffered']
    #allocation8 [shape = 'u8[4096]{0}', space=vmem, size = 0x1000, scoped, tag = 'output window, operand 1, single buffered']
    #allocation9 [shape = 's32[1]{0}', space=sflag, size = 0x4, scoped, tag = 'scoped memory for tpu_custom_call.1']
    %9 = vsyncpa [#allocation3], 0
    %10 = vsyncpa [#allocation6], 0
    %11 = vsyncpa [#allocation4], 0
    %12 = vsyncpa [#allocation9], 0
    // Predicated region
    $region2: #{tpu_custom_call.1} parent=1 // pred_check
      _
    $region3: #{tpu_custom_call.1} parent=1 // pred_check_branch
      %14 = sbr.rel (0) target = $region5
    $region4: #{tpu_custom_call.1} parent=1 // pred_region
      %s15 = sadd.s32 0, 0
      %p16 = scmp.lt.s32.totalorder %s15, 0
      %s17 = scalar_select %p16, %s15, 0
      %s18 = smul.u32 4, %s17
      %s20 = ssub.s32 512, 512
      %21 = vsyncadd [#allocation3], %s20
      %s22 = smul.addr %s18, 128
      %s23 = scalar_lea.hbm %s0, %s22
      %s24 = sshll.u32 [#allocation2], 4
      %s25 = int_to_ptr.vmem [resolvable:$true] %s24
      %30 = dma.hbm_to_vmem [thread:$0]  %s23, 512, %s25, [#allocation3], 128, 128, 8
    $region5: #{tpu_custom_call.1} parent=1 // pred_fallthru
      _
    // Predicated region
    $region6: #{tpu_custom_call.1} parent=1 // pred_check
      _
    $region7: #{tpu_custom_call.1} parent=1 // pred_check_branch
      %32 = sbr.rel (0) target = $region9
    $region8: #{tpu_custom_call.1} parent=1 // pred_region
      %s33 = sadd.s32 0, 0
      %p34 = scmp.lt.s32.totalorder %s33, 0
      %s35 = scalar_select %p34, %s33, 0
      %s36 = smul.u32 4, %s35
      %s38 = ssub.s32 512, 512
      %39 = vsyncadd [#allocation6], %s38
      %s40 = smul.addr %s36, 128
      %s41 = scalar_lea.hbm %s1, %s40
      %s42 = sshll.u32 [#allocation5], 4
      %s43 = int_to_ptr.vmem [resolvable:$true] %s42
      %48 = dma.hbm_to_vmem [thread:$0]  %s41, 512, %s43, [#allocation6], 128, 128, 8
    $region9: #{tpu_custom_call.1} parent=1 // pred_fallthru
      _
    // Predicated region
    $region10: #{tpu_custom_call.1} parent=1 // pred_check
      _
    $region11: #{tpu_custom_call.1} parent=1 // pred_check_branch
      %50 = sbr.rel (0) target = $region13
    $region12: #{tpu_custom_call.1} parent=1 // pred_region
      %51 = dma.done [#allocation3], 512
    $region13: #{tpu_custom_call.1} parent=1 // pred_fallthru
      _
    // Predicated region
    $region14: #{tpu_custom_call.1} parent=1 // pred_check
      _
    $region15: #{tpu_custom_call.1} parent=1 // pred_check_branch
      %53 = sbr.rel (0) target = $region17
    $region16: #{tpu_custom_call.1} parent=1 // pred_region
      %54 = dma.done [#allocation6], 512
    $region17: #{tpu_custom_call.1} parent=1 // pred_fallthru
      _
    %s55 = sadd.s32 0, 0
    %p56 = scmp.lt.s32.totalorder %s55, 0
    %s57 = scalar_select %p56, %s55, 0
    %s58 = smul.u32 4, %s57
    %s59 = sadd.s32 0, 0
    %p60 = scmp.lt.s32.totalorder %s59, 0
    %s61 = scalar_select %p60, %s59, 0
    %s62 = smul.u32 4, %s61
    %s63 = sadd.s32 0, 0
    %s64 = smul.u32 %s63, 32
    %p65 = scmp.eq.s32.totalorder 0, 0
    // Predicated region
    $region18: #{tpu_custom_call.1} parent=1 // pred_check
      %p66 = pneg %p65
    $region19: #{tpu_custom_call.1} parent=1 // pred_check_branch
      %68 = sbr.rel (%p66) target = $region21
    $region20: #{tpu_custom_call.1} parent=1 // pred_region
      %69 = vst [vmem:[#allocation7] sm:$0xff] 0.0
      %70 = vst [vmem:[#allocation8] sm:$0xff] 0.0
    $region21: #{tpu_custom_call.1} parent=1 // pred_fallthru
      _
    %s71 = sadd.s32 %s64, 32
    %p72 = scmp.le.s32.totalorder %s71, 32
    // Predicated region
    $region22: #{tpu_custom_call.1} parent=1 // pred_check
      %p73 = pneg %p72
    $region23: #{tpu_custom_call.1} parent=1 // pred_check_branch
      %75 = sbr.rel (%p73) target = $region25
    $region24: #{tpu_custom_call.1} parent=1 // pred_region
      %v76 = vld [vmem:[#allocation2] sm:$0xff]
      %v77 = vld [vmem:[#allocation2 + $0x8] sm:$0xff]
      %v78 = vld [vmem:[#allocation2 + $0x10] sm:$0xff]
      %v79 = vld [vmem:[#allocation2 + $0x18] sm:$0xff]
      %v80 = vld [vmem:[#allocation5] sm:$0xff]
      %v81 = vld [vmem:[#allocation5 + $0x8] sm:$0xff]
      %v82 = vld [vmem:[#allocation5 + $0x10] sm:$0xff]
      %v83 = vld [vmem:[#allocation5 + $0x18] sm:$0xff]
      %v84 = vld [vmem:[#allocation7] sm:$0xff]
      %v85 = vmul.f32 %v76, %v80
      %v86 = vmul.f32 %v77, %v81
      %v87 = vmul.f32 %v78, %v82
      %v88 = vmul.f32 %v79, %v83
      %v89 = vadd.f32 %v85, %v86
      %v90 = vadd.f32 %v89, %v87
      %v91 = vadd.f32 %v90, %v88
      %v92 = vadd.f32 %v84, %v91
      %93 = vst [vmem:[#allocation7] sm:$0xff] %v92
      %v94 = vld [vmem:[#allocation8] sm:$0xff]
      %v95 = vadd.f32 %v76, %v80
      %v96 = vadd.f32 %v77, %v81
      %v97 = vadd.f32 %v78, %v82
      %v98 = vadd.f32 %v79, %v83
      %v99 = vadd.f32 %v95, %v96
      %v100 = vadd.f32 %v99, %v97
      %v101 = vadd.f32 %v100, %v98
      %v102 = vadd.f32 %v94, %v101
      %103 = vst [vmem:[#allocation8] sm:$0xff] %v102
    $region25: #{tpu_custom_call.1} parent=1 // pred_fallthru
      _
    %p104 = scmp.gt.s32.totalorder %s71, 32
    // Predicated region
    $region26: #{tpu_custom_call.1} parent=1 // pred_check
      %p105 = pneg %p104
    $region27: #{tpu_custom_call.1} parent=1 // pred_check_branch
      %107 = sbr.rel (%p105) target = $region29
    $region28: #{tpu_custom_call.1} parent=1 // pred_region
      %v108 = vld [vmem:[#allocation2] sm:$0xff]
      %v109 = vld [vmem:[#allocation2 + $0x8] sm:$0xff]
      %v110 = vld [vmem:[#allocation2 + $0x10] sm:$0xff]
      %v111 = vld [vmem:[#allocation2 + $0x18] sm:$0xff]
      %v112 = vld [vmem:[#allocation5] sm:$0xff]
      %v113 = vld [vmem:[#allocation5 + $0x8] sm:$0xff]
      %v114 = vld [vmem:[#allocation5 + $0x10] sm:$0xff]
      %v115 = vld [vmem:[#allocation5 + $0x18] sm:$0xff]
      %s116 = sadd.s32 %s64, 0
      %v117 = vlaneseq
      %v118 = vshrl.u32 %v117, 7
      %v119 = vadd.s32 %v118, 8
      %v120 = vadd.s32 %v118, 16
      %v121 = vadd.s32 %v118, 24
      %v122 = vstv %s116
      %v123 = vadd.s32 %v122, %v118
      %v124 = vadd.s32 %v122, %v119
      %v125 = vadd.s32 %v122, %v120
      %v126 = vadd.s32 %v122, %v121
      %vm127 = vcmp.lt.s32.totalorder %v123, 32
      %vm128 = vcmp.lt.s32.totalorder %v124, 32
      %vm129 = vcmp.lt.s32.totalorder %v125, 32
      %vm130 = vcmp.lt.s32.totalorder %v126, 32
      %v131 = vsel %vm127, %v108, 0.0
      %v132 = vsel %vm128, %v109, 0.0
      %v133 = vsel %vm129, %v110, 0.0
      %v134 = vsel %vm130, %v111, 0.0
      %v135 = vsel %vm127, %v112, 0.0
      %v136 = vsel %vm128, %v113, 0.0
      %v137 = vsel %vm129, %v114, 0.0
      %v138 = vsel %vm130, %v115, 0.0
      %v139 = vld [vmem:[#allocation7] sm:$0xff]
      %v140 = vmul.f32 %v131, %v135
      %v141 = vmul.f32 %v132, %v136
      %v142 = vmul.f32 %v133, %v137
      %v143 = vmul.f32 %v134, %v138
      %v144 = vadd.f32 %v140, %v141
      %v145 = vadd.f32 %v144, %v142
      %v146 = vadd.f32 %v145, %v143
      %v147 = vadd.f32 %v139, %v146
      %148 = vst [vmem:[#allocation7] sm:$0xff] %v147
      %v149 = vld [vmem:[#allocation8] sm:$0xff]
      %v150 = vadd.f32 %v131, %v135
      %v151 = vadd.f32 %v132, %v136
      %v152 = vadd.f32 %v133, %v137
      %v153 = vadd.f32 %v134, %v138
      %v154 = vadd.f32 %v150, %v151
      %v155 = vadd.f32 %v154, %v152
      %v156 = vadd.f32 %v155, %v153
      %v157 = vadd.f32 %v149, %v156
      %158 = vst [vmem:[#allocation8] sm:$0xff] %v157
    $region29: #{tpu_custom_call.1} parent=1 // pred_fallthru
      _
    // Predicated region
    $region30: #{tpu_custom_call.1} parent=1 // pred_check
      _
    $region31: #{tpu_custom_call.1} parent=1 // pred_check_branch
      %160 = sbr.rel (0) target = $region33
    $region32: #{tpu_custom_call.1} parent=1 // pred_region
      %s162 = ssub.s32 128, 128
      %163 = vsyncadd [#allocation4], %s162
      %s165 = sshll.u32 [#allocation7], 4
      %s166 = int_to_ptr.vmem [resolvable:$true] %s165
      %168 = dma.vmem_to_hbm [thread:$0]  %s166, 128, %s2, [#allocation4]
    $region33: #{tpu_custom_call.1} parent=1 // pred_fallthru
      _
    // Predicated region
    $region34: #{tpu_custom_call.1} parent=1 // pred_check
      _
    $region35: #{tpu_custom_call.1} parent=1 // pred_check_branch
      %170 = sbr.rel (0) target = $region37
    $region36: #{tpu_custom_call.1} parent=1 // pred_region
      %s172 = ssub.s32 128, 128
      %173 = vsyncadd [#allocation9], %s172
      %s175 = sshll.u32 [#allocation8], 4
      %s176 = int_to_ptr.vmem [resolvable:$true] %s175
      %178 = dma.vmem_to_hbm [thread:$0]  %s176, 128, %s3, [#allocation9]
    $region37: #{tpu_custom_call.1} parent=1 // pred_fallthru
      _
    // Predicated region
    $region38: #{tpu_custom_call.1} parent=1 // pred_check
      _
    $region39: #{tpu_custom_call.1} parent=1 // pred_check_branch
      %180 = sbr.rel (0) target = $region41
    $region40: #{tpu_custom_call.1} parent=1 // pred_region
      %181 = dma.done [#allocation4], 128
    $region41: #{tpu_custom_call.1} parent=1 // pred_fallthru
      _
    // Predicated region
    $region42: #{tpu_custom_call.1} parent=1 // pred_check
      _
    $region43: #{tpu_custom_call.1} parent=1 // pred_check_branch
      %183 = sbr.rel (0) target = $region45
    $region44: #{tpu_custom_call.1} parent=1 // pred_region
      %184 = dma.done [#allocation9], 128
    $region45: #{tpu_custom_call.1} parent=1 // pred_fallthru
      _
    %185 = vsyncpa [#allocation3], 1
    %186 = vsyncpa [#allocation6], 1
    %187 = vsyncpa [#allocation4], 1
    %188 = vsyncpa [#allocation9], 1

</llo_original>
